<compile_context>
chip_gen: v7x
topology: tpu7x:2x2x1
jax: 0.10.0
libtpu: 0.0.40
codegen_flags: <defaults>
</compile_context>

<pallas_src>
import math
import functools

import jax
import jax.numpy as jnp
from jax.experimental import pallas as pl
from jax.experimental.pallas import tpu as pltpu


# ----------------------------------------------------------------------------
# Pallas kernel 1: element-wise sigmoid over (rows, 128) slabs, tiled over rows.
# ----------------------------------------------------------------------------
def _sigmoid_kernel(x_ref, o_ref):
    o_ref[...] = jax.nn.sigmoid(x_ref[...])


def sigmoid_pallas(x):
    flat = x.reshape(-1)
    n = flat.shape[0]
    pad = (-n) % 128
    if pad:
        flat = jnp.pad(flat, (0, pad))
    slab = flat.reshape(-1, 128)                 # lane-dense slab
    rows = slab.shape[0]
    tile = rows                                  # fallback: whole array as one block
    for cand in (1024, 512, 256, 128, 64, 32, 16, 8):
        if rows % cand == 0:
            tile = cand
            break
    out = pl.pallas_call(
        _sigmoid_kernel,
        out_shape=jax.ShapeDtypeStruct(slab.shape, slab.dtype),
        grid=(rows // tile,),
        in_specs=[pl.BlockSpec((tile, 128), lambda i: (i, 0))],
        out_specs=pl.BlockSpec((tile, 128), lambda i: (i, 0)),
        compiler_params=pltpu.CompilerParams(dimension_semantics=("parallel",)),
    )(slab)
    out = out.reshape(-1)
    if pad:
        out = out[:n]
    return out.reshape(x.shape)


# ----------------------------------------------------------------------------
# Pallas kernel 2: EmissionAbsorption raymarcher (tiled over rays).
#   absorb[p]  = prod_{q<p} (1 - d[q])          (shifted cumprod; eps=1e-10 rounds away in f32)
#   weights[p] = d[p] * absorb[p]
#   features   = sum_p weights[p] * colors[:, p]
#   opacity    = 1 - prod_p (1 - d[p])
# Input block:  (4, 1, P, T)  channel 0 = density, 1..3 = colors
# Output block: (1, 4, T)     [rgb, opacity], NR on lanes.
# ----------------------------------------------------------------------------
def _ea_raymarch_kernel(s_ref, o_ref, absorb_ref):
    blk = s_ref[...].astype(jnp.float32)         # (4, 1, P, T)
    d = blk[0, 0]                                # (P, T)
    cols = blk[1:4, 0]                           # (3, P, T)
    n_pts, n_rays = d.shape

    one_minus = 1.0 - d                          # (P, T), dense

    # Shifted cumprod along the point axis: short serial loop writing rows into scratch.
    running = jnp.ones((1, n_rays), jnp.float32)
    absorb_ref[pl.ds(0, 1), :] = running
    for p in range(1, n_pts):
        running = running * one_minus[p - 1:p, :]
        absorb_ref[pl.ds(p, 1), :] = running
    total = running * one_minus[n_pts - 1:n_pts, :]      # prod over all points, (1, T)

    absorb = absorb_ref[...]                     # (P, T)
    weights = d * absorb                         # (P, T)  dense VALU
    feat = jnp.sum(weights[None, :, :] * cols, axis=1)   # (3, T)  sublane reduce (XLU)

    o_ref[0, 0:3, :] = feat
    o_ref[0, 3:4, :] = 1.0 - total


def _pick_tile_nr(NR, P, budget_bytes=8 << 20):
    """Ray-tile width: multiple of 128 dividing NR, ~2 bufs x 4ch x P x T x 4B <= budget."""
    if NR % 128 != 0:
        return NR                                # full extent (allowed as a block dim)
    max_tile = budget_bytes // (2 * 4 * P * 4)
    max_tile = max(128, (max_tile // 128) * 128)
    tile = min(NR, max_tile)
    while NR % tile != 0:
        tile -= 128
    return tile


def ea_raymarch(samp):
    # samp: (4, B, P, NR) f32 (density + 3 colors) -> (B, 4, NR) f32 (rgb + opacity)
    C4, B, P, NR = samp.shape
    assert C4 == 4
    tile = _pick_tile_nr(NR, P)
    return pl.pallas_call(
        _ea_raymarch_kernel,
        out_shape=jax.ShapeDtypeStruct((B, 4, NR), jnp.float32),
        grid=(B, NR // tile),
        in_specs=[pl.BlockSpec((4, 1, P, tile), lambda b, t: (0, b, 0, t))],
        out_specs=pl.BlockSpec((1, 4, tile), lambda b, t: (b, 0, t)),
        scratch_shapes=[pltpu.VMEM((P, tile), jnp.float32)],
        compiler_params=pltpu.CompilerParams(
            dimension_semantics=("parallel", "parallel"),
            vmem_limit_bytes=32 * 1024 * 1024,
        ),
    )(samp)


# ----------------------------------------------------------------------------
# JAX glue: NDC grid raysampler (ray points in world coords, pytorch3d conventions)
# Returns (B, P, NR, 3): point axis BEFORE ray axis so sampled tensors need no transpose.
# ----------------------------------------------------------------------------
def make_ray_points(Rmat, T, H, W, n_pts, min_depth, max_depth, focal):
    xs = jnp.linspace(1.0 - 1.0 / W, -1.0 + 1.0 / W, W)
    ys = jnp.linspace(1.0 - 1.0 / H, -1.0 + 1.0 / H, H)
    Y, X = jnp.meshgrid(ys, xs, indexing="ij")              # (H, W)
    xy = jnp.stack([X, Y], axis=-1).reshape(-1, 2)          # (NR, 2)
    depths = jnp.linspace(min_depth, max_depth, n_pts)      # (P,)

    def per_cam(Rb, Tb):
        def unproj(depth):
            cam = jnp.concatenate(
                [xy * depth / focal, jnp.full((xy.shape[0], 1), depth)], axis=-1)
            # pytorch3d row-vector convention: X_cam = X_world @ R + T
            return (cam - Tb) @ Rb.T
        p1 = unproj(1.0)
        p2 = unproj(2.0)
        dirs = p2 - p1                                       # direction per unit depth
        orig = p1 - dirs                                     # GridRaysampler origin
        return orig[None, :, :] + depths[:, None, None] * dirs[None, :, :]  # (P, NR, 3)

    return jax.vmap(per_cam)(Rmat, T)                        # (B, P, NR, 3)


# ----------------------------------------------------------------------------
# JAX glue: trilinear grid_sample (align_corners=True, zero padding outside [-1,1])
# TODO(synk): data-dependent gather; no clean Pallas/TPU equivalent without manual DMA.
# ----------------------------------------------------------------------------
def trilinear_sample(vol, pts_local):
    # vol: (C, D, Hv, Wv); pts_local: (..., 3) with xyz -> (Wv, Hv, D) axes
    C, D, Hv, Wv = vol.shape
    x = (pts_local[..., 0] + 1.0) * 0.5 * (Wv - 1)
    y = (pts_local[..., 1] + 1.0) * 0.5 * (Hv - 1)
    z = (pts_local[..., 2] + 1.0) * 0.5 * (D - 1)
    in_bounds = jnp.all((pts_local >= -1.0) & (pts_local <= 1.0), axis=-1)

    x0f, y0f, z0f = jnp.floor(x), jnp.floor(y), jnp.floor(z)
    tx, ty, tz = x - x0f, y - y0f, z - z0f
    x0 = jnp.clip(x0f, 0, Wv - 1).astype(jnp.int32)
    x1 = jnp.clip(x0f + 1, 0, Wv - 1).astype(jnp.int32)
    y0 = jnp.clip(y0f, 0, Hv - 1).astype(jnp.int32)
    y1 = jnp.clip(y0f + 1, 0, Hv - 1).astype(jnp.int32)
    z0 = jnp.clip(z0f, 0, D - 1).astype(jnp.int32)
    z1 = jnp.clip(z0f + 1, 0, D - 1).astype(jnp.int32)

    def g(zi, yi, xi):
        return vol[:, zi, yi, xi]   # (C, ...)

    c000, c100 = g(z0, y0, x0), g(z0, y0, x1)
    c010, c110 = g(z0, y1, x0), g(z0, y1, x1)
    c001, c101 = g(z1, y0, x0), g(z1, y0, x1)
    c011, c111 = g(z1, y1, x0), g(z1, y1, x1)

    c00 = c000 * (1 - tx) + c100 * tx
    c10 = c010 * (1 - tx) + c110 * tx
    c01 = c001 * (1 - tx) + c101 * tx
    c11 = c011 * (1 - tx) + c111 * tx
    c0 = c00 * (1 - ty) + c10 * ty
    c1 = c01 * (1 - ty) + c11 * ty
    out = c0 * (1 - tz) + c1 * tz
    return out * in_bounds[None].astype(vol.dtype)           # (C, ...)


# ----------------------------------------------------------------------------
# VolumeModel.forward
# ----------------------------------------------------------------------------
def volume_model_forward(log_densities, log_colors, Rmat, T, *,
                         voxel_size, render_size, n_pts, min_depth, max_depth, focal):
    # Fuse densities + colors into one (4, D, H, W) volume: one sigmoid, one gather.
    log_vol = jnp.concatenate([log_densities, log_colors], axis=0)   # (4, D, H, W)
    vol = sigmoid_pallas(log_vol)                                    # Pallas element-wise

    B = Rmat.shape[0]
    H = W = render_size
    NR = H * W

    # ray points in world coords, then to volume-local coords ([-1,1], align_corners)
    pts_world = make_ray_points(Rmat, T, H, W, n_pts, min_depth, max_depth, focal)
    vol_size = log_densities.shape[1]
    scale = 0.5 * voxel_size * (vol_size - 1)
    pts_local = pts_world / scale                                    # (B, P, NR, 3)

    samp = trilinear_sample(vol, pts_local).astype(jnp.float32)      # (4, B, P, NR)

    out = ea_raymarch(samp)                                          # (B, 4, NR)
    imgs = jnp.transpose(out, (0, 2, 1)).reshape(B, H, W, 4)
    return imgs                                                      # (B, H, W, 4) rgb+opacity


if __name__ == "__main__":
    # Small shapes consistent with the module (scaled down).
    B = 2
    render_size = 16          # image H = W
    n_pts = 8                 # n_pts_per_ray
    vol_size = 16             # volume_size per axis
    voxel_size = 0.15
    min_depth, max_depth = 0.1, 3.0
    focal = 1.0 / math.tan(math.radians(60.0) / 2.0)   # FoV-60 perspective camera

    # Parameters exactly as VolumeModel.__init__ (deterministic, no checkpoint):
    log_densities = -4.0 * jnp.ones((1, vol_size, vol_size, vol_size), jnp.float32)
    log_colors = jnp.zeros((3, vol_size, vol_size, vol_size), jnp.float32)

    # Deterministic "cameras": R (B,3,3), T (B,3) from PRNGKey(0) azimuth angles.
    key = jax.random.PRNGKey(0)
    ang = jax.random.uniform(key, (B,), minval=0.0, maxval=2.0 * math.pi)
    c, s = jnp.cos(ang), jnp.sin(ang)
    z0, o1 = jnp.zeros_like(c), jnp.ones_like(c)
    Rmat = jnp.stack([jnp.stack([c, z0, s], -1),
                      jnp.stack([z0, o1, z0], -1),
                      jnp.stack([-s, z0, c], -1)], axis=-2)            # (B, 3, 3)
    T = jnp.tile(jnp.array([0.0, 0.0, 2.0], jnp.float32), (B, 1))      # (B, 3)

    fwd = jax.jit(functools.partial(
        volume_model_forward,
        voxel_size=voxel_size, render_size=render_size, n_pts=n_pts,
        min_depth=min_depth, max_depth=max_depth, focal=focal))

    imgs = fwd(log_densities, log_colors, Rmat, T)
    jax.block_until_ready(imgs)

    assert imgs.shape == (B, render_size, render_size, 4)
    assert bool(jnp.all(jnp.isfinite(imgs)))
    print("KERNEL_OK")
</pallas_src>

<mosaic_0001>
module attributes {stable_mosaic.version = 11 : i64} {
  func.func private @main(%arg0: i32) attributes {dimension_semantics = [#tpu.dimension_semantics<core_parallel>], iteration_bounds = array<i64: 2>, tpu.core_type = #tpu.core_type<sc_scalar_subcore>, window_params = []} {
    return
  }
}

module attributes {stable_mosaic.version = 11 : i64} {
  func.func private @main(%arg0: i32) attributes {dimension_semantics = [#tpu.dimension_semantics<core_parallel>], iteration_bounds = array<i64: 2>, tpu.core_type = #tpu.core_type<sc_scalar_subcore>, window_params = []} {
    return
  }
}

module attributes {stable_mosaic.version = 11 : i64} {
  func.func @_sigmoid_kernel(%arg0: i32, %arg1: memref<128x128xf32, #tpu.memory_space<vmem>>, %arg2: memref<128x128xf32, #tpu.memory_space<vmem>>) attributes {dimension_semantics = [#tpu.dimension_semantics<parallel>], iteration_bounds = array<i64: 1>, scalar_prefetch = 0 : i64, scratch_operands = 0 : i64, tpu.core_type = #tpu.core_type<tc>, window_params = [{transform_indices = @transform_0, window_bounds = array<i64: 128, 128>}, {transform_indices = @transform_1, window_bounds = array<i64: 128, 128>}]} {
    %c0 = arith.constant 0 : index
    %c0_0 = arith.constant 0 : index
    %0 = vector.load %arg1[%c0, %c0_0] : memref<128x128xf32, #tpu.memory_space<vmem>>, vector<128x128xf32>
    %1 = arith.negf %0 : vector<128x128xf32>
    %2 = math.exp %1 : vector<128x128xf32>
    %cst = arith.constant 1.000000e+00 : f32
    %3 = vector.broadcast %cst : f32 to vector<128x128xf32>
    %4 = arith.addf %3, %2 : vector<128x128xf32>
    %5 = arith.divf %3, %4 : vector<128x128xf32>
    %c0_1 = arith.constant 0 : index
    %c0_2 = arith.constant 0 : index
    %6 = vector.load %arg2[%c0_1, %c0_2] : memref<128x128xf32, #tpu.memory_space<vmem>>, vector<128x128xf32>
    tpu.vector_store %arg2[%c0_1, %c0_2], %5 {strides = array<i32>} : memref<128x128xf32, #tpu.memory_space<vmem>>, vector<128x128xf32>,
    return
  }
  func.func @transform_0(%arg0: i32) -> (i32, i32) {
    %c0_i32 = arith.constant 0 : i32
    %c0_i32_0 = arith.constant 0 : i32
    return %arg0, %c0_i32 : i32, i32
  }
  func.func @transform_1(%arg0: i32) -> (i32, i32) {
    %c0_i32 = arith.constant 0 : i32
    %c0_i32_0 = arith.constant 0 : i32
    return %arg0, %c0_i32 : i32, i32
  }
}

module attributes {stable_mosaic.version = 11 : i64} {
  func.func @_ea_raymarch_kernel(%arg0: i32, %arg1: i32, %arg2: memref<4x1x8x256xf32, #tpu.memory_space<vmem>>, %arg3: memref<1x4x256xf32, #tpu.memory_space<vmem>>, %arg4: memref<8x256xf32, #tpu.memory_space<vmem>>) attributes {dimension_semantics = [#tpu.dimension_semantics<parallel>, #tpu.dimension_semantics<parallel>], iteration_bounds = array<i64: 2, 1>, scalar_prefetch = 0 : i64, scratch_operands = 1 : i64, tpu.core_type = #tpu.core_type<tc>, window_params = [{transform_indices = @transform_0, window_bounds = array<i64: 4, 1, 8, 256>}, {transform_indices = @transform_1, window_bounds = array<i64: 1, 4, 256>}]} {
    %c0 = arith.constant 0 : index
    %c0_0 = arith.constant 0 : index
    %c0_1 = arith.constant 0 : index
    %c0_2 = arith.constant 0 : index
    %0 = vector.load %arg2[%c0, %c0_0, %c0_1, %c0_2] : memref<4x1x8x256xf32, #tpu.memory_space<vmem>>, vector<4x1x8x256xf32>
    %1 = vector.extract_strided_slice %0 {offsets = [0, 0, 0, 0], sizes = [1, 1, 8, 256], strides = [1, 1, 1, 1]} : vector<4x1x8x256xf32> to vector<1x1x8x256xf32>
    %2 = vector.shape_cast %1 : vector<1x1x8x256xf32> to vector<8x256xf32>
    %3 = vector.extract_strided_slice %0 {offsets = [1, 0, 0, 0], sizes = [3, 1, 8, 256], strides = [1, 1, 1, 1]} : vector<4x1x8x256xf32> to vector<3x1x8x256xf32>
    %4 = vector.shape_cast %3 : vector<3x1x8x256xf32> to vector<3x8x256xf32>
    %cst = arith.constant 1.000000e+00 : f32
    %5 = vector.broadcast %cst : f32 to vector<8x256xf32>
    %6 = arith.subf %5, %2 : vector<8x256xf32>
    %cst_3 = arith.constant 1.000000e+00 : f32
    %7 = vector.broadcast %cst_3 : f32 to vector<1x256xf32>
    %c0_4 = arith.constant 0 : index
    %c0_5 = arith.constant 0 : index
    %8 = vector.load %arg4[%c0_4, %c0_5] : memref<8x256xf32, #tpu.memory_space<vmem>>, vector<1x256xf32>
    tpu.vector_store %arg4[%c0_4, %c0_5], %7 {strides = array<i32>} : memref<8x256xf32, #tpu.memory_space<vmem>>, vector<1x256xf32>,
    %9 = vector.extract_strided_slice %6 {offsets = [0, 0], sizes = [1, 256], strides = [1, 1]} : vector<8x256xf32> to vector<1x256xf32>
    %10 = arith.mulf %7, %9 : vector<1x256xf32>
    %c1 = arith.constant 1 : index
    %c0_6 = arith.constant 0 : index
    %11 = vector.load %arg4[%c1, %c0_6] : memref<8x256xf32, #tpu.memory_space<vmem>>, vector<1x256xf32>
    tpu.vector_store %arg4[%c1, %c0_6], %10 {strides = array<i32>} : memref<8x256xf32, #tpu.memory_space<vmem>>, vector<1x256xf32>,
    %12 = vector.extract_strided_slice %6 {offsets = [1, 0], sizes = [1, 256], strides = [1, 1]} : vector<8x256xf32> to vector<1x256xf32>
    %13 = arith.mulf %10, %12 : vector<1x256xf32>
    %c2 = arith.constant 2 : index
    %c0_7 = arith.constant 0 : index
    %14 = vector.load %arg4[%c2, %c0_7] : memref<8x256xf32, #tpu.memory_space<vmem>>, vector<1x256xf32>
    tpu.vector_store %arg4[%c2, %c0_7], %13 {strides = array<i32>} : memref<8x256xf32, #tpu.memory_space<vmem>>, vector<1x256xf32>,
    %15 = vector.extract_strided_slice %6 {offsets = [2, 0], sizes = [1, 256], strides = [1, 1]} : vector<8x256xf32> to vector<1x256xf32>
    %16 = arith.mulf %13, %15 : vector<1x256xf32>
    %c3 = arith.constant 3 : index
    %c0_8 = arith.constant 0 : index
    %17 = vector.load %arg4[%c3, %c0_8] : memref<8x256xf32, #tpu.memory_space<vmem>>, vector<1x256xf32>
    tpu.vector_store %arg4[%c3, %c0_8], %16 {strides = array<i32>} : memref<8x256xf32, #tpu.memory_space<vmem>>, vector<1x256xf32>,
    %18 = vector.extract_strided_slice %6 {offsets = [3, 0], sizes = [1, 256], strides = [1, 1]} : vector<8x256xf32> to vector<1x256xf32>
    %19 = arith.mulf %16, %18 : vector<1x256xf32>
    %c4 = arith.constant 4 : index
    %c0_9 = arith.constant 0 : index
    %20 = vector.load %arg4[%c4, %c0_9] : memref<8x256xf32, #tpu.memory_space<vmem>>, vector<1x256xf32>
    tpu.vector_store %arg4[%c4, %c0_9], %19 {strides = array<i32>} : memref<8x256xf32, #tpu.memory_space<vmem>>, vector<1x256xf32>,
    %21 = vector.extract_strided_slice %6 {offsets = [4, 0], sizes = [1, 256], strides = [1, 1]} : vector<8x256xf32> to vector<1x256xf32>
    %22 = arith.mulf %19, %21 : vector<1x256xf32>
    %c5 = arith.constant 5 : index
    %c0_10 = arith.constant 0 : index
    %23 = vector.load %arg4[%c5, %c0_10] : memref<8x256xf32, #tpu.memory_space<vmem>>, vector<1x256xf32>
    tpu.vector_store %arg4[%c5, %c0_10], %22 {strides = array<i32>} : memref<8x256xf32, #tpu.memory_space<vmem>>, vector<1x256xf32>,
    %24 = vector.extract_strided_slice %6 {offsets = [5, 0], sizes = [1, 256], strides = [1, 1]} : vector<8x256xf32> to vector<1x256xf32>
    %25 = arith.mulf %22, %24 : vector<1x256xf32>
    %c6 = arith.constant 6 : index
    %c0_11 = arith.constant 0 : index
    %26 = vector.load %arg4[%c6, %c0_11] : memref<8x256xf32, #tpu.memory_space<vmem>>, vector<1x256xf32>
    tpu.vector_store %arg4[%c6, %c0_11], %25 {strides = array<i32>} : memref<8x256xf32, #tpu.memory_space<vmem>>, vector<1x256xf32>,
    %27 = vector.extract_strided_slice %6 {offsets = [6, 0], sizes = [1, 256], strides = [1, 1]} : vector<8x256xf32> to vector<1x256xf32>
    %28 = arith.mulf %25, %27 : vector<1x256xf32>
    %c7 = arith.constant 7 : index
    %c0_12 = arith.constant 0 : index
    %29 = vector.load %arg4[%c7, %c0_12] : memref<8x256xf32, #tpu.memory_space<vmem>>, vector<1x256xf32>
    tpu.vector_store %arg4[%c7, %c0_12], %28 {strides = array<i32>} : memref<8x256xf32, #tpu.memory_space<vmem>>, vector<1x256xf32>,
    %30 = vector.extract_strided_slice %6 {offsets = [7, 0], sizes = [1, 256], strides = [1, 1]} : vector<8x256xf32> to vector<1x256xf32>
    %31 = arith.mulf %28, %30 : vector<1x256xf32>
    %c0_13 = arith.constant 0 : index
    %c0_14 = arith.constant 0 : index
    %32 = vector.load %arg4[%c0_13, %c0_14] : memref<8x256xf32, #tpu.memory_space<vmem>>, vector<8x256xf32>
    %33 = arith.mulf %2, %32 : vector<8x256xf32>
    %34 = vector.shape_cast %33 : vector<8x256xf32> to vector<1x8x256xf32>
    %35 = vector.broadcast %34 : vector<1x8x256xf32> to vector<3x8x256xf32>
    %36 = arith.mulf %35, %4 : vector<3x8x256xf32>
    %cst_15 = arith.constant dense<0.000000e+00> : vector<3x256xf32>
    %37 = vector.multi_reduction <add>, %36, %cst_15 [1] : vector<3x8x256xf32> to vector<3x256xf32>
    %c0_16 = arith.constant 0 : index
    %c0_17 = arith.constant 0 : index
    %c0_18 = arith.constant 0 : index
    %38 = vector.load %arg3[%c0_16, %c0_17, %c0_18] : memref<1x4x256xf32, #tpu.memory_space<vmem>>, vector<1x3x256xf32>
    %39 = vector.shape_cast %38 : vector<1x3x256xf32> to vector<3x256xf32>
    %40 = vector.shape_cast %37 : vector<3x256xf32> to vector<1x3x256xf32>
    tpu.vector_store %arg3[%c0_16, %c0_17, %c0_18], %40 {strides = array<i32>} : memref<1x4x256xf32, #tpu.memory_space<vmem>>, vector<1x3x256xf32>,
    %cst_19 = arith.constant 1.000000e+00 : f32
    %41 = vector.broadcast %cst_19 : f32 to vector<1x256xf32>
    %42 = arith.subf %41, %31 : vector<1x256xf32>
    %c0_20 = arith.constant 0 : index
    %c3_21 = arith.constant 3 : index
    %c0_22 = arith.constant 0 : index
    %43 = vector.load %arg3[%c0_20, %c3_21, %c0_22] : memref<1x4x256xf32, #tpu.memory_space<vmem>>, vector<1x1x256xf32>
    %44 = vector.shape_cast %43 : vector<1x1x256xf32> to vector<1x256xf32>
    %45 = vector.shape_cast %42 : vector<1x256xf32> to vector<1x1x256xf32>
    tpu.vector_store %arg3[%c0_20, %c3_21, %c0_22], %45 {strides = array<i32>} : memref<1x4x256xf32, #tpu.memory_space<vmem>>, vector<1x1x256xf32>,
    return
  }
  func.func @transform_0(%arg0: i32, %arg1: i32) -> (i32, i32, i32, i32) {
    %c0_i32 = arith.constant 0 : i32
    %c0_i32_0 = arith.constant 0 : i32
    %c0_i32_1 = arith.constant 0 : i32
    return %c0_i32, %arg0, %c0_i32_0, %arg1 : i32, i32, i32, i32
  }
  func.func @transform_1(%arg0: i32, %arg1: i32) -> (i32, i32, i32) {
    %c0_i32 = arith.constant 0 : i32
    %c0_i32_0 = arith.constant 0 : i32
    return %arg0, %c0_i32, %arg1 : i32, i32, i32
  }
}

</mosaic_0001>

<llo_original>
// kernel: volume_model_forward.2
$region0: #{volume_model_forward.2}
  #allocation0 [shape = 'u32[]', space=smem, size = 0x4, offset = 0x4, fixed_abs, tag = 'smem constant byte address 0x4 - core index']
  #allocation1 [shape = 'u32[144,128]{1,0:T(1,128)}', space=vmem, size = 0x12000, scoped, tag = 'internal scratch']
  %s0 = inlined_call_operand.vmem [shape: f32[128,128], index: 0, kind: input, shape index: {}]
  %s1 = inlined_call_operand.vmem [shape: f32[128,128], index: 1, kind: output, shape index: {}]
  %s2 = sld [smem:[#allocation0]]
  $region14: #{volume_model_forward.2} parent=0
    _
  %s4 = ssub.s32 1, %s2
  %s5 = scalar_select 0, %s4, %s2
  // Predicated region
  $region2: #{volume_model_forward.2} parent=0 // pred_check
    _
  $region3: #{volume_model_forward.2} parent=0 // pred_check_branch
    %7 = sbr.rel (0) target = $region5
  $region4: #{volume_model_forward.2} parent=0 // pred_region
    _
  $region5: #{volume_model_forward.2} parent=0 // pred_fallthru
    _
  %v8 = vld [vmem:[%s0] sm:$0xff]
  %v9 = vld [vmem:[%s0 + $0x8] sm:$0xff]
  %v10 = vld [vmem:[%s0 + $0x10] sm:$0xff]
  %v11 = vld [vmem:[%s0 + $0x18] sm:$0xff]
  %v12 = vld [vmem:[%s0 + $0x20] sm:$0xff]
  %v13 = vld [vmem:[%s0 + $0x28] sm:$0xff]
  %v14 = vld [vmem:[%s0 + $0x30] sm:$0xff]
  %v15 = vld [vmem:[%s0 + $0x38] sm:$0xff]
  %v16 = vld [vmem:[%s0 + $0x40] sm:$0xff]
  %v17 = vld [vmem:[%s0 + $0x48] sm:$0xff]
  %v18 = vld [vmem:[%s0 + $0x50] sm:$0xff]
  %v19 = vld [vmem:[%s0 + $0x58] sm:$0xff]
  %v20 = vld [vmem:[%s0 + $0x60] sm:$0xff]
  %v21 = vld [vmem:[%s0 + $0x68] sm:$0xff]
  %v22 = vld [vmem:[%s0 + $0x70] sm:$0xff]
  %v23 = vld [vmem:[%s0 + $0x78] sm:$0xff]
  %v24 = vxor.u32 %v8, 2147483648
  %v25 = vxor.u32 %v9, 2147483648
  %v26 = vxor.u32 %v10, 2147483648
  %v27 = vxor.u32 %v11, 2147483648
  %v28 = vxor.u32 %v12, 2147483648
  %v29 = vxor.u32 %v13, 2147483648
  %v30 = vxor.u32 %v14, 2147483648
  %v31 = vxor.u32 %v15, 2147483648
  %v32 = vxor.u32 %v16, 2147483648
  %v33 = vxor.u32 %v17, 2147483648
  %v34 = vxor.u32 %v18, 2147483648
  %v35 = vxor.u32 %v19, 2147483648
  %v36 = vxor.u32 %v20, 2147483648
  %v37 = vxor.u32 %v21, 2147483648
  %v38 = vxor.u32 %v22, 2147483648
  %v39 = vxor.u32 %v23, 2147483648
  %v40 = vmul.f32 %v24, 1.442695
  %v41 = vpow.pop %v40
  %v42 = vmul.f32 %v25, 1.442695
  %v43 = vpow.pop %v42
  %v44 = vmul.f32 %v26, 1.442695
  %v45 = vpow.pop %v44
  %v46 = vmul.f32 %v27, 1.442695
  %v47 = vpow.pop %v46
  %v48 = vmul.f32 %v28, 1.442695
  %v49 = vpow.pop %v48
  %v50 = vmul.f32 %v29, 1.442695
  %v51 = vpow.pop %v50
  %v52 = vmul.f32 %v30, 1.442695
  %v53 = vpow.pop %v52
  %v54 = vmul.f32 %v31, 1.442695
  %v55 = vpow.pop %v54
  %v56 = vmul.f32 %v32, 1.442695
  %v57 = vpow.pop %v56
  %v58 = vmul.f32 %v33, 1.442695
  %v59 = vpow.pop %v58
  %v60 = vmul.f32 %v34, 1.442695
  %v61 = vpow.pop %v60
  %v62 = vmul.f32 %v35, 1.442695
  %v63 = vpow.pop %v62
  %v64 = vmul.f32 %v36, 1.442695
  %v65 = vpow.pop %v64
  %v66 = vmul.f32 %v37, 1.442695
  %v67 = vpow.pop %v66
  %v68 = vmul.f32 %v38, 1.442695
  %v69 = vpow.pop %v68
  %v70 = vmul.f32 %v39, 1.442695
  %v71 = vpow.pop %v70
  %v72 = vadd.f32 %v41, 1.0
  %v73 = vadd.f32 %v43, 1.0
  %v74 = vadd.f32 %v45, 1.0
  %v75 = vadd.f32 %v47, 1.0
  %v76 = vadd.f32 %v49, 1.0
  %v77 = vadd.f32 %v51, 1.0
  %v78 = vadd.f32 %v53, 1.0
  %v79 = vadd.f32 %v55, 1.0
  %v80 = vadd.f32 %v57, 1.0
  %v81 = vadd.f32 %v59, 1.0
  %v82 = vadd.f32 %v61, 1.0
  %v83 = vadd.f32 %v63, 1.0
  %v84 = vadd.f32 %v65, 1.0
  %v85 = vadd.f32 %v67, 1.0
  %v86 = vadd.f32 %v69, 1.0
  %v87 = vadd.f32 %v71, 1.0
  %v88 = vrcp.pop %v72
  %v89 = vmul.f32 1.0, %v88
  %v90 = vrcp.pop %v73
  %v91 = vmul.f32 1.0, %v90
  %v92 = vrcp.pop %v74
  %v93 = vmul.f32 1.0, %v92
  %v94 = vrcp.pop %v75
  %v95 = vmul.f32 1.0, %v94
  %v96 = vrcp.pop %v76
  %v97 = vmul.f32 1.0, %v96
  %v98 = vrcp.pop %v77
  %v99 = vmul.f32 1.0, %v98
  %v100 = vrcp.pop %v78
  %v101 = vmul.f32 1.0, %v100
  %v102 = vrcp.pop %v79
  %v103 = vmul.f32 1.0, %v102
  %v104 = vrcp.pop %v80
  %v105 = vmul.f32 1.0, %v104
  %v106 = vrcp.pop %v81
  %v107 = vmul.f32 1.0, %v106
  %v108 = vrcp.pop %v82
  %v109 = vmul.f32 1.0, %v108
  %v110 = vrcp.pop %v83
  %v111 = vmul.f32 1.0, %v110
  %v112 = vrcp.pop %v84
  %v113 = vmul.f32 1.0, %v112
  %v114 = vrcp.pop %v85
  %v115 = vmul.f32 1.0, %v114
  %v116 = vrcp.pop %v86
  %v117 = vmul.f32 1.0, %v116
  %v118 = vrcp.pop %v87
  %v119 = vmul.f32 1.0, %v118
  %120 = vst [vmem:[%s1] sm:$0xff] %v89
  %121 = vst [vmem:[%s1 + $0x8] sm:$0xff] %v91
  %122 = vst [vmem:[%s1 + $0x10] sm:$0xff] %v93
  %123 = vst [vmem:[%s1 + $0x18] sm:$0xff] %v95
  %124 = vst [vmem:[%s1 + $0x20] sm:$0xff] %v97
  %125 = vst [vmem:[%s1 + $0x28] sm:$0xff] %v99
  %126 = vst [vmem:[%s1 + $0x30] sm:$0xff] %v101
  %127 = vst [vmem:[%s1 + $0x38] sm:$0xff] %v103
  %128 = vst [vmem:[%s1 + $0x40] sm:$0xff] %v105
  %129 = vst [vmem:[%s1 + $0x48] sm:$0xff] %v107
  %130 = vst [vmem:[%s1 + $0x50] sm:$0xff] %v109
  %131 = vst [vmem:[%s1 + $0x58] sm:$0xff] %v111
  %132 = vst [vmem:[%s1 + $0x60] sm:$0xff] %v113
  %133 = vst [vmem:[%s1 + $0x68] sm:$0xff] %v115
  %134 = vst [vmem:[%s1 + $0x70] sm:$0xff] %v117
  %135 = vst [vmem:[%s1 + $0x78] sm:$0xff] %v119
  // Predicated region
  $region6: #{volume_model_forward.2} parent=0 // pred_check
    _
  $region7: #{volume_model_forward.2} parent=0 // pred_check_branch
    %137 = sbr.rel (0) target = $region9
  $region8: #{volume_model_forward.2} parent=0 // pred_region
    _
  $region9: #{volume_model_forward.2} parent=0 // pred_fallthru
    _
  // Predicated region
  $region10: #{volume_model_forward.2} parent=0 // pred_check
    _
  $region11: #{volume_model_forward.2} parent=0 // pred_check_branch
    %139 = sbr.rel (0) target = $region13
  $region12: #{volume_model_forward.2} parent=0 // pred_region
    _
  $region13: #{volume_model_forward.2} parent=0 // pred_fallthru
    _

// kernel: volume_model_forward.3
$region0: #{volume_model_forward.3}
  #allocation0 [shape = 'u32[]', space=smem, size = 0x4, offset = 0x4, fixed_abs, tag = 'smem constant byte address 0x4 - core index']
  #allocation1 [shape = 'u32[144,128]{1,0:T(1,128)}', space=vmem, size = 0x12000, scoped, tag = 'internal scratch']
  #allocation2 [shape = 'f32[8,256]{1,0:T(8,128)}', space=vmem, size = 0x2000, scoped, tag = 'scratch operand']
  %s0 = inlined_call_operand.vmem [shape: f32[4,2,8,256], index: 0, kind: input, shape index: {}]
  %s1 = inlined_call_operand.vmem [shape: f32[2,4,256], index: 1, kind: output, shape index: {}]
  %s2 = sld [smem:[#allocation0]]
  $region60: #{volume_model_forward.3} parent=0
    _
  %s4 = ssub.s32 1, %s2
  %s5 = scalar_select 0, %s4, %s2
  $region1: #{volume_model_forward.3} parent=0
    #allocation3 [shape = 'u8[65536]{0}', space=vmem, size = 0x10000, scoped, tag = 'input window, operand 0']
    loop: start=0, step=1, limit=4
    $region2: #{volume_model_forward.3} parent=1 // loop_pre_header
      _
    $region3: #{volume_model_forward.3} parent=1 // loop_header
      %s7 = sphi 0, %s11
      %p8 = scmp.ge.s32.totalorder %s7, 4
      %s14 = sphi 0, %s26
      %s15 = sphi 0, %s22
      %s16 = sphi 0, %s14
      %s17 = sphi 0, %s15
      %s18 = sphi 0, %s16
      %s19 = sphi 0, %s17
      %s31 = sphi 0, %s33
      %s34 = sphi 0, %s31
      %s35 = sphi 0, %s34
      %s51 = sphi 0, %s35
      %s59 = sphi 0, %s61
      %s62 = sphi 0, %s59
      %s63 = sphi 0, %s62
      %s79 = sphi 0, %s63
    $region4: #{volume_model_forward.3} parent=1 // loop_header_branch
      %10 = sbr.rel (%p8) target = $region8
    $region5: #{volume_model_forward.3} parent=1 // loop_body
      %s12 = ssub.s32 %s7, 1
      %s13 = ssub.s32 %s7, 2
      %s20 = sadd.s32 1, %s15
      %p21 = scmp.ge.s32.totalorder %s20, 1
      %s22 = scalar_select %p21, 0, %s20
      %s23 = sadd.s32 1, %s14
      %s24 = scalar_select %p21, %s23, %s14
      %p25 = scmp.ge.s32.totalorder %s24, 2
      %s26 = scalar_select %p25, 0, %s24
      %s27 = ssub.s32 %s14, %s26
      %s28 = ssub.s32 %s15, %s22
      %s29 = sor.u32 %s27, %s28
      %p30 = scmp.eq.s32.totalorder %s29, 0
      %s32 = sadd.s32 %s31, 1
      %s33 = scalar_select %p30, %s31, %s32
      %p36 = pneg %p30
      %p37 = scmp.eq.s32.totalorder %s7, 1
      %p38 = por %p36, %p37
      %p39 = scmp.ne.s32.totalorder %s31, %s34
      %p40 = scmp.eq.s32.totalorder %s7, 0
      %p41 = por %p39, %p40
      %p42 = scmp.ne.s32.totalorder %s31, %s34
      %p43 = scmp.eq.s32.totalorder %s12, 1
      %p44 = por %p42, %p43
      %p45 = scmp.ne.s32.totalorder %s34, %s35
      %p46 = scmp.eq.s32.totalorder %s12, 0
      %p47 = por %p45, %p46
      %p48 = scmp.ne.s32.totalorder %s34, %s35
      %p49 = scmp.eq.s32.totalorder %s13, 1
      %p50 = por %p48, %p49
      %p52 = scmp.ne.s32.totalorder %s35, %s51
      %p53 = scmp.eq.s32.totalorder %s13, 0
      %p54 = por %p52, %p53
      %s55 = ssub.s32 %s14, %s26
      %s56 = ssub.s32 %s15, %s22
      %s57 = sor.u32 %s55, %s56
      %p58 = scmp.eq.s32.totalorder %s57, 0
      %s60 = sadd.s32 %s59, 1
      %s61 = scalar_select %p58, %s59, %s60
      %p64 = pneg %p58
      %p65 = scmp.eq.s32.totalorder %s7, 1
      %p66 = por %p64, %p65
      %p67 = scmp.ne.s32.totalorder %s59, %s62
      %p68 = scmp.eq.s32.totalorder %s7, 0
      %p69 = por %p67, %p68
      %p70 = scmp.ne.s32.totalorder %s59, %s62
      %p71 = scmp.eq.s32.totalorder %s12, 1
      %p72 = por %p70, %p71
      %p73 = scmp.ne.s32.totalorder %s62, %s63
      %p74 = scmp.eq.s32.totalorder %s12, 0
      %p75 = por %p73, %p74
      %p76 = scmp.ne.s32.totalorder %s62, %s63
      %p77 = scmp.eq.s32.totalorder %s13, 1
      %p78 = por %p76, %p77
      %p80 = scmp.ne.s32.totalorder %s63, %s79
      %p81 = scmp.eq.s32.totalorder %s13, 0
      %p82 = por %p80, %p81
      %p83 = scmp.le.s32.totalorder 1, %s7
      %p84 = scmp.lt.s32.totalorder %s7, 3
      %p85 = pnand %p83, %p84
      %p86 = pneg %p85
      // Predicated region
      $region9: #{volume_model_forward.3} parent=5 // pred_check
        _
      $region10: #{volume_model_forward.3} parent=5 // pred_check_branch
        %88 = sbr.rel (%p85) target = $region12
      $region11: #{volume_model_forward.3} parent=5 // pred_region
        %s89 = ssub.s32 %s7, 1
      $region12: #{volume_model_forward.3} parent=5 // pred_fallthru
        _
      %p90 = scmp.lt.s32.totalorder %s7, 2
      // Predicated region
      $region13: #{volume_model_forward.3} parent=5 // pred_check
        %p91 = pneg %p90
      $region14: #{volume_model_forward.3} parent=5 // pred_check_branch
        %93 = sbr.rel (%p91) target = $region16
      $region15: #{volume_model_forward.3} parent=5 // pred_region
        // Predicated region
        $region17: #{volume_model_forward.3} parent=15 // pred_check
          %p94 = pneg %p41
        $region18: #{volume_model_forward.3} parent=15 // pred_check_branch
          %96 = sbr.rel (%p94) target = $region20
        $region19: #{volume_model_forward.3} parent=15 // pred_region
          %s97 = sand.u32 %s31, 1
          %s98 = sand.u32 %s31, 1
          %s99 = smul.addr %s98, 64
          %s100 = scalar_lea.vmem [#allocation3], %s99
          %s101 = smul.u32 2, %s15
          %s102 = smul.addr %s14, 2
          %s103 = sadd.s32 %s101, %s102
          %s104 = smul.addr %s103, 8
          %s105 = scalar_lea.vmem %s0, %s104
          // Predicated region
          $region21: #{volume_model_forward.3} parent=19 // pred_check
            _
          $region22: #{volume_model_forward.3} parent=19 // pred_check_branch
            %107 = sbr.rel (0) target = $region24
          $region23: #{volume_model_forward.3} parent=19 // pred_region
            // Predicated region
            $region25: #{volume_model_forward.3} parent=23 // pred_check
              _
            $region26: #{volume_model_forward.3} parent=23 // pred_check_branch
              %109 = sbr.rel (0) target = $region28
            $region27: #{volume_model_forward.3} parent=23 // pred_region
              loop: start=0, step=1, limit=1
              $region29: #{volume_model_forward.3} parent=27 // loop_pre_header
                _
              $region30: #{volume_model_forward.3} parent=27 // loop_header
                %s111 = sphi 0, %s115
                %p112 = scmp.ge.s32.totalorder %s111, 1
                %s116 = sphi %s105, %s105
                %s117 = sphi %s100, %s100
              $region31: #{volume_model_forward.3} parent=27 // loop_header_branch
                %114 = sbr.rel (%p112) target = $region35
              $region32: #{volume_model_forward.3} parent=27 // loop_body
                %v118 = vld [vmem:[%s116] sm:$0xff]
                %119 = vst [vmem:[%s117] sm:$0xff] %v118
                %v120 = vld [vmem:[%s116 + $0x8] sm:$0xff]
                %121 = vst [vmem:[%s117 + $0x8] sm:$0xff] %v120
                %v122 = vld [vmem:[%s116 + $0x20] sm:$0xff]
                %123 = vst [vmem:[%s117 + $0x10] sm:$0xff] %v122
                %v124 = vld [vmem:[%s116 + $0x28] sm:$0xff]
                %125 = vst [vmem:[%s117 + $0x18] sm:$0xff] %v124
                %v126 = vld [vmem:[%s116 + $0x40] sm:$0xff]
                %127 = vst [vmem:[%s117 + $0x20] sm:$0xff] %v126
                %v128 = vld [vmem:[%s116 + $0x48] sm:$0xff]
                %129 = vst [vmem:[%s117 + $0x28] sm:$0xff] %v128
                %v130 = vld [vmem:[%s116 + $0x60] sm:$0xff]
                %131 = vst [vmem:[%s117 + $0x30] sm:$0xff] %v130
                %v132 = vld [vmem:[%s116 + $0x68] sm:$0xff]
                %133 = vst [vmem:[%s117 + $0x38] sm:$0xff] %v132
              $region33: #{volume_model_forward.3} parent=27 // loop_footer
                %s115 = sadd.s32 1, %s111
              $region34: #{volume_model_forward.3} parent=27 // loop_footer_branch
                %110 = sbr.rel target = $region30
              $region35: #{volume_model_forward.3} parent=27 // loop_exit
                _
            $region28: #{volume_model_forward.3} parent=23 // pred_fallthru
              _
            // Predicated region
            $region36: #{volume_model_forward.3} parent=23 // pred_check
              _
            $region37: #{volume_model_forward.3} parent=23 // pred_check_branch
              %135 = sbr.rel target = $region39
            $region38: #{volume_model_forward.3} parent=23 // pred_region
              _
            $region39: #{volume_model_forward.3} parent=23 // pred_fallthru
              _
          $region24: #{volume_model_forward.3} parent=19 // pred_fallthru
            _
          %136 = vnop
        $region20: #{volume_model_forward.3} parent=15 // pred_fallthru
          _
      $region16: #{volume_model_forward.3} parent=5 // pred_fallthru
        _
      %p137 = scmp.le.s32.totalorder 1, %s7
      %p138 = scmp.lt.s32.totalorder %s7, 3
      %p139 = pnand %p137, %p138
      %p140 = pneg %p139
      // Predicated region
      $region40: #{volume_model_forward.3} parent=5 // pred_check
        _
      $region41: #{volume_model_forward.3} parent=5 // pred_check_branch
        %142 = sbr.rel (%p139) target = $region43
      $region42: #{volume_model_forward.3} parent=5 // pred_region
        %s143 = ssub.s32 %s7, 1
        %s144 = sand.u32 %s34, 1
        %s145 = sand.u32 %s34, 1
        %s146 = smul.addr %s145, 64
        %s147 = scalar_lea.vmem [#allocation3], %s146
        // Predicated region
        $region44: #{volume_model_forward.3} parent=42 // pred_check
          %p148 = pneg %p47
        $region45: #{volume_model_forward.3} parent=42 // pred_check_branch
          %150 = sbr.rel (%p148) target = $region47
        $region46: #{volume_model_forward.3} parent=42 // pred_region
          _
        $region47: #{volume_model_forward.3} parent=42 // pred_fallthru
          _
        %s151 = sand.u32 %s34, 1
        %s152 = sand.u32 %s34, 1
        %s153 = smul.addr %s152, 64
        %s154 = scalar_lea.vmem [#allocation3], %s153
        %p155 = pneg %p47
        %p156 = pneg %p44
        %p157 = pneg %p75
        %p158 = pneg %p72
        %s159 = smul.u32 2, %s17
        %p160 = scmp.lt.s32.totalorder %s16, 1
        %s161 = scalar_select %p160, %s16, 1
        %p162 = scmp.lt.s32.totalorder %s159, 1
        %s163 = scalar_select %p162, %s159, 1
        %s164 = smul.addr %s161, 2
        %s165 = sadd.s32 %s163, %s164
        %s166 = smul.addr %s165, 4
        %s167 = scalar_lea.vmem %s1, %s166
        %s168 = smul.u32 2, %s17
        %s169 = smul.u32 2, %s17
        %p170 = scmp.lt.s32.totalorder %s16, 1
        %s171 = scalar_select %p170, %s16, 1
        %p172 = scmp.lt.s32.totalorder %s169, 1
        %s173 = scalar_select %p172, %s169, 1
        %s174 = smul.addr %s171, 2
        %s175 = sadd.s32 %s173, %s174
        %s176 = smul.addr %s175, 4
        %s177 = scalar_lea.vmem %s1, %s176
        %s178 = smul.u32 2, %s17
        %v179 = vld [vmem:[%s147] sm:$0xff]
        %v180 = vld [vmem:[%s147 + $0x8] sm:$0xff]
        %v181 = vld [vmem:[%s147 + $0x10] sm:$0xff]
        %v182 = vld [vmem:[%s147 + $0x18] sm:$0xff]
        %v183 = vld [vmem:[%s147 + $0x20] sm:$0xff]
        %v184 = vld [vmem:[%s147 + $0x28] sm:$0xff]
        %v185 = vld [vmem:[%s147 + $0x30] sm:$0xff]
        %v186 = vld [vmem:[%s147 + $0x38] sm:$0xff]
        %v187 = vsub.f32 1.0, %v179
        %v188 = vsub.f32 1.0, %v180
        %v189 = vlaneseq
        %vm190 = vcmp.ge.s32.totalorder %v189, 0
        %vm191 = vcmp.lt.s32.totalorder %v189, 256
        %vm192 = vmand %vm190, %vm191
        %193 = vst.msk [vmem:[#allocation2] ss:$8 sm:$0x3] %vm192, 1.0
        %194 = vst.msk [vmem:[#allocation2] ss:$8 sm:$0x0] %vm192, 1.0
        %v197 = vcombine.low %v187, %v188
        %v199 = vunpack.c.l.s4 1966171168
        %v200 = vunpack.c.0.s8 %v199
        %v201 = vlaneseq
        %v202 = vshrl.u32 %v201, 7
        %v203 = vsub.s32 %v200, %v202
        %v204 = vrot.slane %v197, %v203
        %v206 = vunpack.c.l.s4 1966171168
        %v207 = vunpack.c.0.s8 %v206
        %v208 = vlaneseq
        %v209 = vshrl.u32 %v208, 7
        %v210 = vsub.s32 %v207, %v209
        %v211 = vrot.slane %v204, %v210
        %s213 = scalar_lea.vmem [#allocation2], 1
        %214 = vst.msk [vmem:[%s213] ss:$8 sm:$0x3] %vm192, %v211
        %215 = vst.msk [vmem:[%s213] ss:$8 sm:$0x0] %vm192, %v211
        %v216 = vrot.slane %v187, 1
        %v217 = vrot.slane %v188, 1
        %v220 = vmul.f32 %v187, %v216
        %v221 = vmul.f32 %v188, %v217
        %v224 = vcombine.low %v220, %v221
        %v226 = vunpack.c.l.s4 1966171168
        %v227 = vunpack.c.0.s8 %v226
        %v228 = vlaneseq
        %v229 = vshrl.u32 %v228, 7
        %v230 = vsub.s32 %v227, %v229
        %v231 = vrot.slane %v224, %v230
        %v233 = vunpack.c.l.s4 1966171168
        %v234 = vunpack.c.0.s8 %v233
        %v235 = vlaneseq
        %v236 = vshrl.u32 %v235, 7
        %v237 = vsub.s32 %v234, %v236
        %v238 = vrot.slane %v231, %v237
        %s240 = scalar_lea.vmem [#allocation2], 2
        %241 = vst.msk [vmem:[%s240] ss:$8 sm:$0x3] %vm192, %v238
        %242 = vst.msk [vmem:[%s240] ss:$8 sm:$0x0] %vm192, %v238
        %v243 = vrot.slane %v187, 2
        %v244 = vrot.slane %v188, 2
        %v247 = vmul.f32 %v220, %v243
        %v248 = vmul.f32 %v221, %v244
        %v251 = vcombine.low %v247, %v248
        %v253 = vunpack.c.l.s4 1966171168
        %v254 = vunpack.c.0.s8 %v253
        %v255 = vlaneseq
        %v256 = vshrl.u32 %v255, 7
        %v257 = vsub.s32 %v254, %v256
        %v258 = vrot.slane %v251, %v257
        %v260 = vunpack.c.l.s4 1966171168
        %v261 = vunpack.c.0.s8 %v260
        %v262 = vlaneseq
        %v263 = vshrl.u32 %v262, 7
        %v264 = vsub.s32 %v261, %v263
        %v265 = vrot.slane %v258, %v264
        %s267 = scalar_lea.vmem [#allocation2], 3
        %268 = vst.msk [vmem:[%s267] ss:$8 sm:$0x3] %vm192, %v265
        %269 = vst.msk [vmem:[%s267] ss:$8 sm:$0x0] %vm192, %v265
        %v270 = vrot.slane %v187, 3
        %v271 = vrot.slane %v188, 3
        %v274 = vmul.f32 %v247, %v270
        %v275 = vmul.f32 %v248, %v271
        %v278 = vcombine.low %v274, %v275
        %v280 = vunpack.c.l.s4 1966171168
        %v281 = vunpack.c.0.s8 %v280
        %v282 = vlaneseq
        %v283 = vshrl.u32 %v282, 7
        %v284 = vsub.s32 %v281, %v283
        %v285 = vrot.slane %v278, %v284
        %v287 = vunpack.c.l.s4 1966171168
        %v288 = vunpack.c.0.s8 %v287
        %v289 = vlaneseq
        %v290 = vshrl.u32 %v289, 7
        %v291 = vsub.s32 %v288, %v290
        %v292 = vrot.slane %v285, %v291
        %s294 = scalar_lea.vmem [#allocation2], 4
        %295 = vst.msk [vmem:[%s294] ss:$8 sm:$0x3] %vm192, %v292
        %296 = vst.msk [vmem:[%s294] ss:$8 sm:$0x0] %vm192, %v292
        %v297 = vrot.slane %v187, 4
        %v298 = vrot.slane %v188, 4
        %v301 = vmul.f32 %v274, %v297
        %v302 = vmul.f32 %v275, %v298
        %v305 = vcombine.low %v301, %v302
        %v307 = vunpack.c.l.s4 1966171168
        %v308 = vunpack.c.0.s8 %v307
        %v309 = vlaneseq
        %v310 = vshrl.u32 %v309, 7
        %v311 = vsub.s32 %v308, %v310
        %v312 = vrot.slane %v305, %v311
        %v314 = vunpack.c.l.s4 1966171168
        %v315 = vunpack.c.0.s8 %v314
        %v316 = vlaneseq
        %v317 = vshrl.u32 %v316, 7
        %v318 = vsub.s32 %v315, %v317
        %v319 = vrot.slane %v312, %v318
        %s321 = scalar_lea.vmem [#allocation2], 5
        %322 = vst.msk [vmem:[%s321] ss:$8 sm:$0x3] %vm192, %v319
        %323 = vst.msk [vmem:[%s321] ss:$8 sm:$0x0] %vm192, %v319
        %v324 = vrot.slane %v187, 5
        %v325 = vrot.slane %v188, 5
        %v328 = vmul.f32 %v301, %v324
        %v329 = vmul.f32 %v302, %v325
        %v332 = vcombine.low %v328, %v329
        %v334 = vunpack.c.l.s4 1966171168
        %v335 = vunpack.c.0.s8 %v334
        %v336 = vlaneseq
        %v337 = vshrl.u32 %v336, 7
        %v338 = vsub.s32 %v335, %v337
        %v339 = vrot.slane %v332, %v338
        %v341 = vunpack.c.l.s4 1966171168
        %v342 = vunpack.c.0.s8 %v341
        %v343 = vlaneseq
        %v344 = vshrl.u32 %v343, 7
        %v345 = vsub.s32 %v342, %v344
        %v346 = vrot.slane %v339, %v345
        %s348 = scalar_lea.vmem [#allocation2], 6
        %349 = vst.msk [vmem:[%s348] ss:$8 sm:$0x3] %vm192, %v346
        %350 = vst.msk [vmem:[%s348] ss:$8 sm:$0x0] %vm192, %v346
        %v351 = vrot.slane %v187, 6
        %v352 = vrot.slane %v188, 6
        %v355 = vmul.f32 %v328, %v351
        %v356 = vmul.f32 %v329, %v352
        %v359 = vcombine.low %v355, %v356
        %v361 = vunpack.c.l.s4 1966171168
        %v362 = vunpack.c.0.s8 %v361
        %v363 = vlaneseq
        %v364 = vshrl.u32 %v363, 7
        %v365 = vsub.s32 %v362, %v364
        %v366 = vrot.slane %v359, %v365
        %v368 = vunpack.c.l.s4 1966171168
        %v369 = vunpack.c.0.s8 %v368
        %v370 = vlaneseq
        %v371 = vshrl.u32 %v370, 7
        %v372 = vsub.s32 %v369, %v371
        %v373 = vrot.slane %v366, %v372
        %s375 = scalar_lea.vmem [#allocation2], 7
        %376 = vst.msk [vmem:[%s375] ss:$8 sm:$0x3] %vm192, %v373
        %377 = vst.msk [vmem:[%s375] ss:$8 sm:$0x0] %vm192, %v373
        %v378 = vrot.slane %v187, 7
        %v379 = vrot.slane %v188, 7
        %v382 = vmul.f32 %v355, %v378
        %v383 = vmul.f32 %v356, %v379
        %v384 = vld [vmem:[#allocation2] sm:$0xff]
        %v385 = vld [vmem:[#allocation2 + $0x8] sm:$0xff]
        %v386 = vmul.f32 %v179, %v384
        %v387 = vmul.f32 %v180, %v385
        %v388 = vmul.f32 %v386, %v181
        %v389 = vmul.f32 %v387, %v182
        %v390 = vmul.f32 %v386, %v183
        %v391 = vmul.f32 %v387, %v184
        %v392 = vmul.f32 %v386, %v185
        %v393 = vmul.f32 %v387, %v186
        %v394 = vrot.slane %v388, 4
        %v395 = vadd.f32 %v388, %v394
        %v396 = vrot.slane %v395, 2
        %v397 = vadd.f32 %v395, %v396
        %v398 = vrot.slane %v397, 1
        %v399 = vadd.f32 %v397, %v398
        %v400 = vrot.slane %v389, 4
        %v401 = vadd.f32 %v389, %v400
        %v402 = vrot.slane %v401, 2
        %v403 = vadd.f32 %v401, %v402
        %v404 = vrot.slane %v403, 1
        %v405 = vadd.f32 %v403, %v404
        %v406 = vrot.slane %v390, 4
        %v407 = vadd.f32 %v390, %v406
        %v408 = vrot.slane %v407, 2
        %v409 = vadd.f32 %v407, %v408
        %v410 = vrot.slane %v409, 1
        %v411 = vadd.f32 %v409, %v410
        %v412 = vrot.slane %v391, 4
        %v413 = vadd.f32 %v391, %v412
        %v414 = vrot.slane %v413, 2
        %v415 = vadd.f32 %v413, %v414
        %v416 = vrot.slane %v415, 1
        %v417 = vadd.f32 %v415, %v416
        %v418 = vrot.slane %v392, 4
        %v419 = vadd.f32 %v392, %v418
        %v420 = vrot.slane %v419, 2
        %v421 = vadd.f32 %v419, %v420
        %v422 = vrot.slane %v421, 1
        %v423 = vadd.f32 %v421, %v422
        %v424 = vrot.slane %v393, 4
        %v425 = vadd.f32 %v393, %v424
        %v426 = vrot.slane %v425, 2
        %v427 = vadd.f32 %v425, %v426
        %v428 = vrot.slane %v427, 1
        %v429 = vadd.f32 %v427, %v428
        %v436 = vcombine.low %v399, %v405
        %v437 = vcombine.low %v411, %v417
        %v438 = vcombine.low %v423, %v429
        %v439 = vrot.slane %v437, 7
        %vm440 = vcmask 1041409
        %v441 = vsel %vm440, %v439, %v436
        %vm442 = vcmask 1045509
        %v443 = vsel %vm442, %v439, %v441
        %v444 = vrot.slane %v438, 6
        %vm445 = vcmask 1042434
        %v446 = vsel %vm445, %v444, %v443
        %vm447 = vcmask 1046534
        %v448 = vsel %vm447, %v444, %v446
        %450 = vst [vmem:[%s177] sm:$0x77] %v448
        %v451 = vsub.f32 1.0, %v382
        %v452 = vsub.f32 1.0, %v383
        %v455 = vcombine.low %v451, %v452
        %v457 = vunpack.c.l.s4 1966171168
        %v458 = vunpack.c.0.s8 %v457
        %v459 = vlaneseq
        %v460 = vshrl.u32 %v459, 7
        %v461 = vsub.s32 %v458, %v460
        %v462 = vrot.slane %v455, %v461
        %v464 = vunpack.c.l.s4 1966171168
        %v465 = vunpack.c.0.s8 %v464
        %v466 = vlaneseq
        %v467 = vshrl.u32 %v466, 7
        %v468 = vsub.s32 %v465, %v467
        %v469 = vrot.slane %v462, %v468
        %s471 = scalar_lea.vmem %s177, 3
        %472 = vst.msk [vmem:[%s471] ss:$4 sm:$0x3] %vm192, %v469
        %s473 = smul.u32 2, %s17
        %p474 = scmp.lt.s32.totalorder %s16, 1
        %s475 = scalar_select %p474, %s16, 1
        %p476 = scmp.lt.s32.totalorder %s473, 1
        %s477 = scalar_select %p476, %s473, 1
        %s478 = smul.addr %s475, 2
        %s479 = sadd.s32 %s477, %s478
        %s480 = smul.addr %s479, 4
        %s481 = scalar_lea.vmem %s1, %s480
        // Predicated region
        $region48: #{volume_model_forward.3} parent=42 // pred_check
          %p482 = pneg %p72
        $region49: #{volume_model_forward.3} parent=42 // pred_check_branch
          %484 = sbr.rel (%p482) target = $region51
        $region50: #{volume_model_forward.3} parent=42 // pred_region
          %s485 = smul.u32 2, %s17
        $region51: #{volume_model_forward.3} parent=42 // pred_fallthru
          _
      $region43: #{volume_model_forward.3} parent=5 // pred_fallthru
        _
      %p486 = scmp.le.s32.totalorder 2, %s7
      // Predicated region
      $region52: #{volume_model_forward.3} parent=5 // pred_check
        %p487 = pneg %p486
      $region53: #{volume_model_forward.3} parent=5 // pred_check_branch
        %489 = sbr.rel (%p487) target = $region55
      $region54: #{volume_model_forward.3} parent=5 // pred_region
        %s490 = ssub.s32 %s7, 2
        // Predicated region
        $region56: #{volume_model_forward.3} parent=54 // pred_check
          %p491 = pneg %p78
        $region57: #{volume_model_forward.3} parent=54 // pred_check_branch
          %493 = sbr.rel (%p491) target = $region59
        $region58: #{volume_model_forward.3} parent=54 // pred_region
          %s494 = smul.u32 2, %s19
          %p495 = scmp.lt.s32.totalorder %s18, 1
          %s496 = scalar_select %p495, %s18, 1
          %p497 = scmp.lt.s32.totalorder %s494, 1
          %s498 = scalar_select %p497, %s494, 1
          %s499 = smul.addr %s496, 2
          %s500 = sadd.s32 %s498, %s499
          %s501 = smul.addr %s500, 4
          %s502 = scalar_lea.vmem %s1, %s501
        $region59: #{volume_model_forward.3} parent=54 // pred_fallthru
          _
      $region55: #{volume_model_forward.3} parent=5 // pred_fallthru
        _
    $region6: #{volume_model_forward.3} parent=1 // loop_footer
      %s11 = sadd.s32 1, %s7
    $region7: #{volume_model_forward.3} parent=1 // loop_footer_branch
      %6 = sbr.rel target = $region3
    $region8: #{volume_model_forward.3} parent=1 // loop_exit
      _

</llo_original>
